<compile_context>
chip_gen: v7x
topology: tpu7x:2x2x1
jax: 0.10.0
libtpu: 0.0.40
codegen_flags: <defaults>
</compile_context>

<pallas_src>
import functools

import jax
import jax.numpy as jnp
from jax.experimental import pallas as pl
from jax.experimental.pallas import tpu as pltpu


def _round_up(x, m):
    return (x + m - 1) // m * m


def _mlp_kernel(x_ref, w1_ref, b1_ref, w2_ref, b2_ref, w3_ref, b3_ref, o_ref):
    """Fused 3-layer MLP forward on one batch tile (entire hot path in-kernel)."""
    x = x_ref[...]
    # linear1 + relu (f32 accumulation regardless of input dtype)
    h1 = jnp.dot(x, w1_ref[...], preferred_element_type=jnp.float32) + b1_ref[...]
    h1 = jnp.maximum(h1, 0.0)
    # linear2 + relu (cast activation to the weight dtype so the bf16 MXU path is used)
    h2 = jnp.dot(h1.astype(w2_ref.dtype), w2_ref[...],
                 preferred_element_type=jnp.float32) + b2_ref[...]
    h2 = jnp.maximum(h2, 0.0)
    # linear3 (no activation); output block is lane-dense (padded to >=128 columns)
    o_ref[...] = (jnp.dot(h2.astype(w3_ref.dtype), w3_ref[...],
                          preferred_element_type=jnp.float32)
                  + b3_ref[...]).astype(o_ref.dtype)


@functools.partial(jax.jit, static_argnames=("batch_tile", "use_bf16"))
def mynet_forward(x, params, batch_tile=256, use_bf16=False):
    """x: [B, in_put] f32. params: dict of (w1,b1,w2,b2,w3,b3). Returns [B, out_put] f32."""
    assert batch_tile % 8 == 0, "batch_tile must be a multiple of 8 (sublane constraint)"
    w1, b1, w2, b2, w3, b3 = (params["w1"], params["b1"], params["w2"],
                              params["b2"], params["w3"], params["b3"])
    B, in_put = x.shape
    hidden = w1.shape[1]
    hidden1 = w2.shape[1]
    out_put = w3.shape[1]

    # --- lane-dense output: pad final layer's N up to a full 128-lane tile ---------------
    out_pad = _round_up(out_put, 128)
    if out_pad != out_put:
        w3 = jnp.pad(w3, ((0, 0), (0, out_pad - out_put)))
        b3 = jnp.pad(b3, ((0, 0), (0, out_pad - out_put)))

    # --- batch tiling: big tiles, pad B so the grid divides evenly -----------------------
    bt = min(batch_tile, _round_up(B, 8))
    B_pad = _round_up(B, bt)
    if B_pad != B:
        x = jnp.pad(x, ((0, B_pad - B), (0, 0)))

    # --- optional bf16 matmul path (f32 accumulation, f32 biases) ------------------------
    if use_bf16:
        x = x.astype(jnp.bfloat16)
        w1 = w1.astype(jnp.bfloat16)
        w2 = w2.astype(jnp.bfloat16)
        w3 = w3.astype(jnp.bfloat16)

    grid = (B_pad // bt,)

    # Weights/biases are replicated to every grid step (constant block index (0, 0)), so
    # they stay resident in VMEM; only activation rows are tiled over the batch grid axis.
    in_specs = [
        pl.BlockSpec((bt, in_put),        lambda i: (i, 0)),   # x
        pl.BlockSpec((in_put, hidden),    lambda i: (0, 0)),   # w1
        pl.BlockSpec((1, hidden),         lambda i: (0, 0)),   # b1
        pl.BlockSpec((hidden, hidden1),   lambda i: (0, 0)),   # w2
        pl.BlockSpec((1, hidden1),        lambda i: (0, 0)),   # b2
        pl.BlockSpec((hidden1, out_pad),  lambda i: (0, 0)),   # w3 (padded)
        pl.BlockSpec((1, out_pad),        lambda i: (0, 0)),   # b3 (padded)
    ]
    out_spec = pl.BlockSpec((bt, out_pad), lambda i: (i, 0))

    itemsize = lambda a: jnp.dtype(a.dtype).itemsize
    bytes_accessed = (x.size * itemsize(x)
                      + w1.size * itemsize(w1) + b1.size * itemsize(b1)
                      + w2.size * itemsize(w2) + b2.size * itemsize(b2)
                      + w3.size * itemsize(w3) + b3.size * itemsize(b3)
                      + B_pad * out_pad * 4)
    cost = pl.CostEstimate(
        flops=2 * B_pad * (in_put * hidden + hidden * hidden1 + hidden1 * out_pad),
        transcendentals=0,
        bytes_accessed=bytes_accessed,
    )

    out = pl.pallas_call(
        _mlp_kernel,
        out_shape=jax.ShapeDtypeStruct((B_pad, out_pad), jnp.float32),
        grid_spec=pltpu.PrefetchScalarGridSpec(
            num_scalar_prefetch=0,
            grid=grid,
            in_specs=in_specs,
            out_specs=out_spec,
        ),
        compiler_params=pltpu.CompilerParams(
            dimension_semantics=("parallel",)),
        cost_estimate=cost,
    )(x, w1, b1, w2, b2, w3, b3)

    # strip batch and lane padding
    return out[:B, :out_put]


def init_params(key, in_put, hidden, hidden1, out_put):
    """Deterministic PyTorch-style Linear init: U(-1/sqrt(fan_in), 1/sqrt(fan_in)).
    Weights stored transposed ([in, out]) relative to torch's [out, in]."""
    ks = jax.random.split(key, 6)

    def lin(kw, kb, fan_in, fan_out):
        bound = 1.0 / jnp.sqrt(float(fan_in))
        w = jax.random.uniform(kw, (fan_in, fan_out), jnp.float32, -bound, bound)
        b = jax.random.uniform(kb, (1, fan_out), jnp.float32, -bound, bound)
        return w, b

    w1, b1 = lin(ks[0], ks[1], in_put, hidden)
    w2, b2 = lin(ks[2], ks[3], hidden, hidden1)
    w3, b3 = lin(ks[4], ks[5], hidden1, out_put)
    return {"w1": w1, "b1": b1, "w2": w2, "b2": b2, "w3": w3, "b3": b3}


def mynet_ref(x, p, compute_dtype=jnp.float32):
    """Pure-JAX reference of MyNet.forward (optionally mirroring the bf16 cast)."""
    cast = lambda a: a.astype(compute_dtype)
    h = jnp.maximum(jnp.dot(cast(x), cast(p["w1"]),
                            preferred_element_type=jnp.float32) + p["b1"], 0.0)
    h = jnp.maximum(jnp.dot(cast(h), cast(p["w2"]),
                            preferred_element_type=jnp.float32) + p["b2"], 0.0)
    return jnp.dot(cast(h), cast(p["w3"]),
                   preferred_element_type=jnp.float32) + p["b3"]


if __name__ == "__main__":
    # Module-implied shapes: hidden=256, hidden1=128, out_put=1; in_put from the csv's
    # feature count (use 32 here). Small batch: B=256 with batch_tile=128 keeps the batch
    # grid length at 2 so both v7x TensorCores get a tile via "parallel" semantics.
    B, IN_PUT, HIDDEN, HIDDEN1, OUT_PUT = 256, 32, 256, 128, 1

    key = jax.random.PRNGKey(0)
    kx, kp = jax.random.split(key)
    x = jax.random.normal(kx, (B, IN_PUT), dtype=jnp.float32)
    params = init_params(kp, IN_PUT, HIDDEN, HIDDEN1, OUT_PUT)

    # f32 path: exact module semantics.
    out = jax.block_until_ready(mynet_forward(x, params, batch_tile=128, use_bf16=False))
    ref = mynet_ref(x, params)
    assert out.shape == (B, OUT_PUT), out.shape
    assert jnp.allclose(out, ref, atol=1e-5, rtol=1e-5), "f32 kernel mismatch vs reference"

    # bf16 MXU path: compare against a reference using the same bf16 casts (f32 accumulation).
    out_bf16 = jax.block_until_ready(mynet_forward(x, params, batch_tile=128, use_bf16=True))
    ref_bf16 = mynet_ref(x, params, compute_dtype=jnp.bfloat16)
    assert out_bf16.shape == (B, OUT_PUT), out_bf16.shape
    assert jnp.allclose(out_bf16, ref_bf16, atol=5e-3, rtol=5e-2), \
        "bf16 kernel mismatch vs bf16 reference"

    print("KERNEL_OK")
</pallas_src>

<mosaic_0001>
module attributes {stable_mosaic.version = 11 : i64} {
  func.func @_mlp_kernel(%arg0: i32, %arg1: memref<128x32xf32, #tpu.memory_space<vmem>>, %arg2: memref<32x256xf32, #tpu.memory_space<vmem>>, %arg3: memref<1x256xf32, #tpu.memory_space<vmem>>, %arg4: memref<256x128xf32, #tpu.memory_space<vmem>>, %arg5: memref<1x128xf32, #tpu.memory_space<vmem>>, %arg6: memref<128x128xf32, #tpu.memory_space<vmem>>, %arg7: memref<1x128xf32, #tpu.memory_space<vmem>>, %arg8: memref<128x128xf32, #tpu.memory_space<vmem>>) attributes {dimension_semantics = [#tpu.dimension_semantics<parallel>], iteration_bounds = array<i64: 2>, scalar_prefetch = 0 : i64, scratch_operands = 0 : i64, tpu.core_type = #tpu.core_type<tc>, window_params = [{transform_indices = @transform_0, window_bounds = array<i64: 128, 32>}, {pipeline_mode = #tpu.pipeline_mode<synchronous>, transform_indices = @transform_1, window_bounds = array<i64: 32, 256>}, {pipeline_mode = #tpu.pipeline_mode<synchronous>, transform_indices = @transform_2, window_bounds = array<i64: 1, 256>}, {pipeline_mode = #tpu.pipeline_mode<synchronous>, transform_indices = @transform_3, window_bounds = array<i64: 256, 128>}, {pipeline_mode = #tpu.pipeline_mode<synchronous>, transform_indices = @transform_4, window_bounds = array<i64: 1, 128>}, {pipeline_mode = #tpu.pipeline_mode<synchronous>, transform_indices = @transform_5, window_bounds = array<i64: 128, 128>}, {pipeline_mode = #tpu.pipeline_mode<synchronous>, transform_indices = @transform_6, window_bounds = array<i64: 1, 128>}, {transform_indices = @transform_7, window_bounds = array<i64: 128, 128>}]} {
    %c0 = arith.constant 0 : index
    %c0_0 = arith.constant 0 : index
    %0 = vector.load %arg1[%c0, %c0_0] : memref<128x32xf32, #tpu.memory_space<vmem>>, vector<128x32xf32>
    %c0_1 = arith.constant 0 : index
    %c0_2 = arith.constant 0 : index
    %1 = vector.load %arg2[%c0_1, %c0_2] : memref<32x256xf32, #tpu.memory_space<vmem>>, vector<32x256xf32>
    %cst = arith.constant dense<0.000000e+00> : vector<128x256xf32>
    %2 = tpu.matmul %0, %1, %cst {dimension_numbers = #tpu.dot_dimension_numbers<[1], [0], [0], [1], [0, 0, 1, 1], [], []>} : vector<128x32xf32>, vector<32x256xf32>, vector<128x256xf32> -> vector<128x256xf32>
    %c0_3 = arith.constant 0 : index
    %c0_4 = arith.constant 0 : index
    %3 = vector.load %arg3[%c0_3, %c0_4] : memref<1x256xf32, #tpu.memory_space<vmem>>, vector<1x256xf32>
    %4 = vector.broadcast %3 : vector<1x256xf32> to vector<128x256xf32>
    %5 = arith.addf %2, %4 : vector<128x256xf32>
    %cst_5 = arith.constant 0.000000e+00 : f32
    %6 = vector.broadcast %cst_5 : f32 to vector<128x256xf32>
    %7 = arith.maximumf %5, %6 : vector<128x256xf32>
    %c0_6 = arith.constant 0 : index
    %c0_7 = arith.constant 0 : index
    %8 = vector.load %arg4[%c0_6, %c0_7] : memref<256x128xf32, #tpu.memory_space<vmem>>, vector<256x128xf32>
    %cst_8 = arith.constant dense<0.000000e+00> : vector<128x128xf32>
    %9 = tpu.matmul %7, %8, %cst_8 {dimension_numbers = #tpu.dot_dimension_numbers<[1], [0], [0], [1], [0, 0, 1, 1], [], []>} : vector<128x256xf32>, vector<256x128xf32>, vector<128x128xf32> -> vector<128x128xf32>
    %c0_9 = arith.constant 0 : index
    %c0_10 = arith.constant 0 : index
    %10 = vector.load %arg5[%c0_9, %c0_10] : memref<1x128xf32, #tpu.memory_space<vmem>>, vector<1x128xf32>
    %11 = vector.broadcast %10 : vector<1x128xf32> to vector<128x128xf32>
    %12 = arith.addf %9, %11 : vector<128x128xf32>
    %cst_11 = arith.constant 0.000000e+00 : f32
    %13 = vector.broadcast %cst_11 : f32 to vector<128x128xf32>
    %14 = arith.maximumf %12, %13 : vector<128x128xf32>
    %c0_12 = arith.constant 0 : index
    %c0_13 = arith.constant 0 : index
    %15 = vector.load %arg6[%c0_12, %c0_13] : memref<128x128xf32, #tpu.memory_space<vmem>>, vector<128x128xf32>
    %cst_14 = arith.constant dense<0.000000e+00> : vector<128x128xf32>
    %16 = tpu.matmul %14, %15, %cst_14 {dimension_numbers = #tpu.dot_dimension_numbers<[1], [0], [0], [1], [0, 0, 1, 1], [], []>} : vector<128x128xf32>, vector<128x128xf32>, vector<128x128xf32> -> vector<128x128xf32>
    %c0_15 = arith.constant 0 : index
    %c0_16 = arith.constant 0 : index
    %17 = vector.load %arg7[%c0_15, %c0_16] : memref<1x128xf32, #tpu.memory_space<vmem>>, vector<1x128xf32>
    %18 = vector.broadcast %17 : vector<1x128xf32> to vector<128x128xf32>
    %19 = arith.addf %16, %18 : vector<128x128xf32>
    %c0_17 = arith.constant 0 : index
    %c0_18 = arith.constant 0 : index
    %20 = vector.load %arg8[%c0_17, %c0_18] : memref<128x128xf32, #tpu.memory_space<vmem>>, vector<128x128xf32>
    tpu.vector_store %arg8[%c0_17, %c0_18], %19 {strides = array<i32>} : memref<128x128xf32, #tpu.memory_space<vmem>>, vector<128x128xf32>,
    return
  }
  func.func @transform_0(%arg0: i32) -> (i32, i32) {
    %c0_i32 = arith.constant 0 : i32
    %c0_i32_0 = arith.constant 0 : i32
    return %arg0, %c0_i32 : i32, i32
  }
  func.func @transform_1(%arg0: i32) -> (i32, i32) {
    %c0_i32 = arith.constant 0 : i32
    %c0_i32_0 = arith.constant 0 : i32
    %c0_i32_1 = arith.constant 0 : i32
    return %c0_i32, %c0_i32_0 : i32, i32
  }
  func.func @transform_2(%arg0: i32) -> (i32, i32) {
    %c0_i32 = arith.constant 0 : i32
    %c0_i32_0 = arith.constant 0 : i32
    %c0_i32_1 = arith.constant 0 : i32
    return %c0_i32, %c0_i32_0 : i32, i32
  }
  func.func @transform_3(%arg0: i32) -> (i32, i32) {
    %c0_i32 = arith.constant 0 : i32
    %c0_i32_0 = arith.constant 0 : i32
    %c0_i32_1 = arith.constant 0 : i32
    return %c0_i32, %c0_i32_0 : i32, i32
  }
  func.func @transform_4(%arg0: i32) -> (i32, i32) {
    %c0_i32 = arith.constant 0 : i32
    %c0_i32_0 = arith.constant 0 : i32
    %c0_i32_1 = arith.constant 0 : i32
    return %c0_i32, %c0_i32_0 : i32, i32
  }
  func.func @transform_5(%arg0: i32) -> (i32, i32) {
    %c0_i32 = arith.constant 0 : i32
    %c0_i32_0 = arith.constant 0 : i32
    %c0_i32_1 = arith.constant 0 : i32
    return %c0_i32, %c0_i32_0 : i32, i32
  }
  func.func @transform_6(%arg0: i32) -> (i32, i32) {
    %c0_i32 = arith.constant 0 : i32
    %c0_i32_0 = arith.constant 0 : i32
    %c0_i32_1 = arith.constant 0 : i32
    return %c0_i32, %c0_i32_0 : i32, i32
  }
  func.func @transform_7(%arg0: i32) -> (i32, i32) {
    %c0_i32 = arith.constant 0 : i32
    %c0_i32_0 = arith.constant 0 : i32
    return %arg0, %c0_i32 : i32, i32
  }
}

</mosaic_0001>

<llo_original>
// kernel: mynet_forward.1
$region0: #{mynet_forward.1}
  #allocation0 [shape = 'u32[]', space=smem, size = 0x4, offset = 0x4, fixed_abs, tag = 'smem constant byte address 0x4 - core index']
  #allocation1 [shape = 'u32[144,128]{1,0:T(1,128)}', space=vmem, size = 0x12000, scoped, tag = 'internal scratch']
  %s0 = inlined_call_operand.vmem [shape: f32[256,32], index: 0, kind: input, shape index: {}]
  %s1 = inlined_call_operand.vmem [shape: f32[32,256], index: 1, kind: input, shape index: {}]
  %s2 = inlined_call_operand.vmem [shape: f32[1,256], index: 2, kind: input, shape index: {}]
  %s3 = inlined_call_operand.vmem [shape: f32[256,128], index: 3, kind: input, shape index: {}]
  %s4 = inlined_call_operand.vmem [shape: f32[1,128], index: 4, kind: input, shape index: {}]
  %s5 = inlined_call_operand.vmem [shape: f32[128,128], index: 5, kind: input, shape index: {}]
  %s6 = inlined_call_operand.vmem [shape: f32[1,128], index: 6, kind: input, shape index: {}]
  %s7 = inlined_call_operand.vmem [shape: f32[256,128], index: 7, kind: output, shape index: {}]
  %s8 = sld [smem:[#allocation0]]
  $region61: #{mynet_forward.1} parent=0
    _
  %s10 = ssub.s32 1, %s8
  %s11 = scalar_select 0, %s10, %s8
  loop: start=0, step=1, limit=4
  $region2: #{mynet_forward.1} parent=0 // loop_pre_header
    _
  $region3: #{mynet_forward.1} parent=0 // loop_header
    %s13 = sphi 0, %s17
    %p14 = scmp.ge.s32.totalorder %s13, 4
    %s23 = sphi 0, %s25
    %s26 = sphi 0, %s23
    %s27 = sphi 0, %s26
    %s43 = sphi 0, %s27
    %s47 = sphi 0, %s47
    %s49 = sphi 0, %s47
    %s50 = sphi 0, %s49
    %s64 = sphi 0, %s50
    %s68 = sphi 0, %s68
    %s70 = sphi 0, %s68
    %s71 = sphi 0, %s70
    %s85 = sphi 0, %s71
    %s89 = sphi 0, %s89
    %s91 = sphi 0, %s89
    %s92 = sphi 0, %s91
    %s106 = sphi 0, %s92
    %s110 = sphi 0, %s110
    %s112 = sphi 0, %s110
    %s113 = sphi 0, %s112
    %s127 = sphi 0, %s113
    %s131 = sphi 0, %s131
    %s133 = sphi 0, %s131
    %s134 = sphi 0, %s133
    %s148 = sphi 0, %s134
    %s152 = sphi 0, %s152
    %s154 = sphi 0, %s152
    %s155 = sphi 0, %s154
    %s169 = sphi 0, %s155
    %s175 = sphi 0, %s177
    %s178 = sphi 0, %s175
    %s179 = sphi 0, %s178
    %s195 = sphi 0, %s179
  $region4: #{mynet_forward.1} parent=0 // loop_header_branch
    %16 = sbr.rel (%p14) target = $region8
  $region5: #{mynet_forward.1} parent=0 // loop_body
    %s18 = ssub.s32 %s13, 1
    %s19 = ssub.s32 %s13, 2
    %s20 = sadd.s32 %s13, 1
    %s21 = ssub.s32 %s13, %s20
    %p22 = scmp.eq.s32.totalorder %s21, 0
    %s24 = sadd.s32 %s23, 1
    %s25 = scalar_select %p22, %s23, %s24
    %p28 = pneg %p22
    %p29 = scmp.eq.s32.totalorder %s13, 1
    %p30 = por %p28, %p29
    %p31 = scmp.ne.s32.totalorder %s23, %s26
    %p32 = scmp.eq.s32.totalorder %s13, 0
    %p33 = por %p31, %p32
    %p34 = scmp.ne.s32.totalorder %s23, %s26
    %p35 = scmp.eq.s32.totalorder %s18, 1
    %p36 = por %p34, %p35
    %p37 = scmp.ne.s32.totalorder %s26, %s27
    %p38 = scmp.eq.s32.totalorder %s18, 0
    %p39 = por %p37, %p38
    %p40 = scmp.ne.s32.totalorder %s26, %s27
    %p41 = scmp.eq.s32.totalorder %s19, 1
    %p42 = por %p40, %p41
    %p44 = scmp.ne.s32.totalorder %s27, %s43
    %p45 = scmp.eq.s32.totalorder %s19, 0
    %p46 = por %p44, %p45
    %s48 = sadd.s32 %s47, 1
    %p51 = scmp.eq.s32.totalorder %s13, 1
    %p52 = scmp.ne.s32.totalorder %s47, %s49
    %p53 = scmp.eq.s32.totalorder %s13, 0
    %p54 = por %p52, %p53
    %p55 = scmp.ne.s32.totalorder %s47, %s49
    %p56 = scmp.eq.s32.totalorder %s18, 1
    %p57 = por %p55, %p56
    %p58 = scmp.ne.s32.totalorder %s49, %s50
    %p59 = scmp.eq.s32.totalorder %s18, 0
    %p60 = por %p58, %p59
    %p61 = scmp.ne.s32.totalorder %s49, %s50
    %p62 = scmp.eq.s32.totalorder %s19, 1
    %p63 = por %p61, %p62
    %p65 = scmp.ne.s32.totalorder %s50, %s64
    %p66 = scmp.eq.s32.totalorder %s19, 0
    %p67 = por %p65, %p66
    %s69 = sadd.s32 %s68, 1
    %p72 = scmp.eq.s32.totalorder %s13, 1
    %p73 = scmp.ne.s32.totalorder %s68, %s70
    %p74 = scmp.eq.s32.totalorder %s13, 0
    %p75 = por %p73, %p74
    %p76 = scmp.ne.s32.totalorder %s68, %s70
    %p77 = scmp.eq.s32.totalorder %s18, 1
    %p78 = por %p76, %p77
    %p79 = scmp.ne.s32.totalorder %s70, %s71
    %p80 = scmp.eq.s32.totalorder %s18, 0
    %p81 = por %p79, %p80
    %p82 = scmp.ne.s32.totalorder %s70, %s71
    %p83 = scmp.eq.s32.totalorder %s19, 1
    %p84 = por %p82, %p83
    %p86 = scmp.ne.s32.totalorder %s71, %s85
    %p87 = scmp.eq.s32.totalorder %s19, 0
    %p88 = por %p86, %p87
    %s90 = sadd.s32 %s89, 1
    %p93 = scmp.eq.s32.totalorder %s13, 1
    %p94 = scmp.ne.s32.totalorder %s89, %s91
    %p95 = scmp.eq.s32.totalorder %s13, 0
    %p96 = por %p94, %p95
    %p97 = scmp.ne.s32.totalorder %s89, %s91
    %p98 = scmp.eq.s32.totalorder %s18, 1
    %p99 = por %p97, %p98
    %p100 = scmp.ne.s32.totalorder %s91, %s92
    %p101 = scmp.eq.s32.totalorder %s18, 0
    %p102 = por %p100, %p101
    %p103 = scmp.ne.s32.totalorder %s91, %s92
    %p104 = scmp.eq.s32.totalorder %s19, 1
    %p105 = por %p103, %p104
    %p107 = scmp.ne.s32.totalorder %s92, %s106
    %p108 = scmp.eq.s32.totalorder %s19, 0
    %p109 = por %p107, %p108
    %s111 = sadd.s32 %s110, 1
    %p114 = scmp.eq.s32.totalorder %s13, 1
    %p115 = scmp.ne.s32.totalorder %s110, %s112
    %p116 = scmp.eq.s32.totalorder %s13, 0
    %p117 = por %p115, %p116
    %p118 = scmp.ne.s32.totalorder %s110, %s112
    %p119 = scmp.eq.s32.totalorder %s18, 1
    %p120 = por %p118, %p119
    %p121 = scmp.ne.s32.totalorder %s112, %s113
    %p122 = scmp.eq.s32.totalorder %s18, 0
    %p123 = por %p121, %p122
    %p124 = scmp.ne.s32.totalorder %s112, %s113
    %p125 = scmp.eq.s32.totalorder %s19, 1
    %p126 = por %p124, %p125
    %p128 = scmp.ne.s32.totalorder %s113, %s127
    %p129 = scmp.eq.s32.totalorder %s19, 0
    %p130 = por %p128, %p129
    %s132 = sadd.s32 %s131, 1
    %p135 = scmp.eq.s32.totalorder %s13, 1
    %p136 = scmp.ne.s32.totalorder %s131, %s133
    %p137 = scmp.eq.s32.totalorder %s13, 0
    %p138 = por %p136, %p137
    %p139 = scmp.ne.s32.totalorder %s131, %s133
    %p140 = scmp.eq.s32.totalorder %s18, 1
    %p141 = por %p139, %p140
    %p142 = scmp.ne.s32.totalorder %s133, %s134
    %p143 = scmp.eq.s32.totalorder %s18, 0
    %p144 = por %p142, %p143
    %p145 = scmp.ne.s32.totalorder %s133, %s134
    %p146 = scmp.eq.s32.totalorder %s19, 1
    %p147 = por %p145, %p146
    %p149 = scmp.ne.s32.totalorder %s134, %s148
    %p150 = scmp.eq.s32.totalorder %s19, 0
    %p151 = por %p149, %p150
    %s153 = sadd.s32 %s152, 1
    %p156 = scmp.eq.s32.totalorder %s13, 1
    %p157 = scmp.ne.s32.totalorder %s152, %s154
    %p158 = scmp.eq.s32.totalorder %s13, 0
    %p159 = por %p157, %p158
    %p160 = scmp.ne.s32.totalorder %s152, %s154
    %p161 = scmp.eq.s32.totalorder %s18, 1
    %p162 = por %p160, %p161
    %p163 = scmp.ne.s32.totalorder %s154, %s155
    %p164 = scmp.eq.s32.totalorder %s18, 0
    %p165 = por %p163, %p164
    %p166 = scmp.ne.s32.totalorder %s154, %s155
    %p167 = scmp.eq.s32.totalorder %s19, 1
    %p168 = por %p166, %p167
    %p170 = scmp.ne.s32.totalorder %s155, %s169
    %p171 = scmp.eq.s32.totalorder %s19, 0
    %p172 = por %p170, %p171
    %s173 = ssub.s32 %s13, %s20
    %p174 = scmp.eq.s32.totalorder %s173, 0
    %s176 = sadd.s32 %s175, 1
    %s177 = scalar_select %p174, %s175, %s176
    %p180 = pneg %p174
    %p181 = scmp.eq.s32.totalorder %s13, 1
    %p182 = por %p180, %p181
    %p183 = scmp.ne.s32.totalorder %s175, %s178
    %p184 = scmp.eq.s32.totalorder %s13, 0
    %p185 = por %p183, %p184
    %p186 = scmp.ne.s32.totalorder %s175, %s178
    %p187 = scmp.eq.s32.totalorder %s18, 1
    %p188 = por %p186, %p187
    %p189 = scmp.ne.s32.totalorder %s178, %s179
    %p190 = scmp.eq.s32.totalorder %s18, 0
    %p191 = por %p189, %p190
    %p192 = scmp.ne.s32.totalorder %s178, %s179
    %p193 = scmp.eq.s32.totalorder %s19, 1
    %p194 = por %p192, %p193
    %p196 = scmp.ne.s32.totalorder %s179, %s195
    %p197 = scmp.eq.s32.totalorder %s19, 0
    %p198 = por %p196, %p197
    %p199 = scmp.le.s32.totalorder 1, %s13
    %p200 = scmp.lt.s32.totalorder %s13, 3
    %p201 = pnand %p199, %p200
    %p202 = pneg %p201
    // Predicated region
    $region9: #{mynet_forward.1} parent=5 // pred_check
      _
    $region10: #{mynet_forward.1} parent=5 // pred_check_branch
      %204 = sbr.rel (%p201) target = $region12
    $region11: #{mynet_forward.1} parent=5 // pred_region
      %s205 = ssub.s32 %s13, 1
      // Predicated region
      $region13: #{mynet_forward.1} parent=11 // pred_check
        %p206 = pneg %p60
      $region14: #{mynet_forward.1} parent=11 // pred_check_branch
        %208 = sbr.rel (%p206) target = $region16
      $region15: #{mynet_forward.1} parent=11 // pred_region
        _
      $region16: #{mynet_forward.1} parent=11 // pred_fallthru
        _
      // Predicated region
      $region17: #{mynet_forward.1} parent=11 // pred_check
        %p209 = pneg %p81
      $region18: #{mynet_forward.1} parent=11 // pred_check_branch
        %211 = sbr.rel (%p209) target = $region20
      $region19: #{mynet_forward.1} parent=11 // pred_region
        _
      $region20: #{mynet_forward.1} parent=11 // pred_fallthru
        _
      // Predicated region
      $region21: #{mynet_forward.1} parent=11 // pred_check
        %p212 = pneg %p102
      $region22: #{mynet_forward.1} parent=11 // pred_check_branch
        %214 = sbr.rel (%p212) target = $region24
      $region23: #{mynet_forward.1} parent=11 // pred_region
        _
      $region24: #{mynet_forward.1} parent=11 // pred_fallthru
        _
      // Predicated region
      $region25: #{mynet_forward.1} parent=11 // pred_check
        %p215 = pneg %p123
      $region26: #{mynet_forward.1} parent=11 // pred_check_branch
        %217 = sbr.rel (%p215) target = $region28
      $region27: #{mynet_forward.1} parent=11 // pred_region
        _
      $region28: #{mynet_forward.1} parent=11 // pred_fallthru
        _
      // Predicated region
      $region29: #{mynet_forward.1} parent=11 // pred_check
        %p218 = pneg %p144
      $region30: #{mynet_forward.1} parent=11 // pred_check_branch
        %220 = sbr.rel (%p218) target = $region32
      $region31: #{mynet_forward.1} parent=11 // pred_region
        _
      $region32: #{mynet_forward.1} parent=11 // pred_fallthru
        _
      // Predicated region
      $region33: #{mynet_forward.1} parent=11 // pred_check
        %p221 = pneg %p165
      $region34: #{mynet_forward.1} parent=11 // pred_check_branch
        %223 = sbr.rel (%p221) target = $region36
      $region35: #{mynet_forward.1} parent=11 // pred_region
        _
      $region36: #{mynet_forward.1} parent=11 // pred_fallthru
        _
    $region12: #{mynet_forward.1} parent=5 // pred_fallthru
      _
    %p224 = scmp.lt.s32.totalorder %s13, 2
    // Predicated region
    $region37: #{mynet_forward.1} parent=5 // pred_check
      %p225 = pneg %p224
    $region38: #{mynet_forward.1} parent=5 // pred_check_branch
      %227 = sbr.rel (%p225) target = $region40
    $region39: #{mynet_forward.1} parent=5 // pred_region
      // Predicated region
      $region41: #{mynet_forward.1} parent=39 // pred_check
        %p228 = pneg %p33
      $region42: #{mynet_forward.1} parent=39 // pred_check_branch
        %230 = sbr.rel (%p228) target = $region44
      $region43: #{mynet_forward.1} parent=39 // pred_region
        %s231 = smul.u32 16, %s13
        %p232 = scmp.lt.s32.totalorder %s231, 31
        %s233 = scalar_select %p232, %s231, 31
        %s234 = smul.addr %s233, 8
        %s235 = scalar_lea.vmem %s0, %s234
        %s236 = smul.u32 16, %s13
      $region44: #{mynet_forward.1} parent=39 // pred_fallthru
        _
    $region40: #{mynet_forward.1} parent=5 // pred_fallthru
      _
    %p237 = scmp.le.s32.totalorder 1, %s13
    %p238 = scmp.lt.s32.totalorder %s13, 3
    %p239 = pnand %p237, %p238
    %p240 = pneg %p239
    // Predicated region
    $region45: #{mynet_forward.1} parent=5 // pred_check
      _
    $region46: #{mynet_forward.1} parent=5 // pred_check_branch
      %242 = sbr.rel (%p239) target = $region48
    $region47: #{mynet_forward.1} parent=5 // pred_region
      %s243 = ssub.s32 %s13, 1
      %s244 = smul.u32 16, %s18
      %p245 = scmp.lt.s32.totalorder %s244, 31
      %s246 = scalar_select %p245, %s244, 31
      %s247 = smul.addr %s246, 8
      %s248 = scalar_lea.vmem %s0, %s247
      %p249 = pneg %p39
      %p250 = pneg %p36
      %p251 = pneg %p60
      %p252 = pneg %p57
      %p253 = pneg %p81
      %p254 = pneg %p78
      %p255 = pneg %p102
      %p256 = pneg %p99
      %p257 = pneg %p123
      %p258 = pneg %p120
      %p259 = pneg %p144
      %p260 = pneg %p141
      %p261 = pneg %p165
      %p262 = pneg %p162
      %p263 = pneg %p191
      %p264 = pneg %p188
      %s265 = smul.u32 16, %s18
      %p266 = scmp.lt.s32.totalorder %s265, 31
      %s267 = scalar_select %p266, %s265, 31
      %s268 = smul.addr %s267, 8
      %s269 = scalar_lea.vmem %s7, %s268
      %s270 = smul.u32 16, %s18
      %p271 = scmp.lt.s32.totalorder %s270, 31
      %s272 = scalar_select %p271, %s270, 31
      %s273 = smul.addr %s272, 8
      %s274 = scalar_lea.vmem %s0, %s273
      %s275 = smul.u32 16, %s18
      %s276 = smul.u32 16, %s18
      %p277 = scmp.lt.s32.totalorder %s276, 31
      %s278 = scalar_select %p277, %s276, 31
      %s279 = smul.addr %s278, 8
      %s280 = scalar_lea.vmem %s7, %s279
      %s281 = smul.u32 16, %s18
      %v282 = vld [vmem:[%s274] sm:$0xff]
      %v283 = vld [vmem:[%s274 + $0x8] sm:$0xff]
      %v284 = vld [vmem:[%s274 + $0x10] sm:$0xff]
      %v285 = vld [vmem:[%s274 + $0x18] sm:$0xff]
      %v286 = vld [vmem:[%s274 + $0x20] sm:$0xff]
      %v287 = vld [vmem:[%s274 + $0x28] sm:$0xff]
      %v288 = vld [vmem:[%s274 + $0x30] sm:$0xff]
      %v289 = vld [vmem:[%s274 + $0x38] sm:$0xff]
      %v290 = vld [vmem:[%s274 + $0x40] sm:$0xff]
      %v291 = vld [vmem:[%s274 + $0x48] sm:$0xff]
      %v292 = vld [vmem:[%s274 + $0x50] sm:$0xff]
      %v293 = vld [vmem:[%s274 + $0x58] sm:$0xff]
      %v294 = vld [vmem:[%s274 + $0x60] sm:$0xff]
      %v295 = vld [vmem:[%s274 + $0x68] sm:$0xff]
      %v296 = vld [vmem:[%s274 + $0x70] sm:$0xff]
      %v297 = vld [vmem:[%s274 + $0x78] sm:$0xff]
      %v298 = vld [vmem:[%s1] sm:$0xff]
      %v299 = vld [vmem:[%s1 + $0x8] sm:$0xff]
      %v300 = vld [vmem:[%s1 + $0x10] sm:$0xff]
      %v301 = vld [vmem:[%s1 + $0x18] sm:$0xff]
      %v302 = vld [vmem:[%s1 + $0x20] sm:$0xff]
      %v303 = vld [vmem:[%s1 + $0x28] sm:$0xff]
      %v304 = vld [vmem:[%s1 + $0x30] sm:$0xff]
      %v305 = vld [vmem:[%s1 + $0x38] sm:$0xff]
      %v306 = vld [vmem:[%s2] sm:$0x3]
      %v308 = vlaneseq
      %v309 = vshrl.u32 %v308, 7
      %v310 = vsub.s32 0, %v309
      %v311 = vrot.slane %v306, %v310
      %v312 = vlaneseq
      %v313 = vshrl.u32 %v312, 7
      %v314 = vsub.s32 1, %v313
      %v315 = vrot.slane %v306, %v314
      %vm318 = vcmask 261120
      %v320 = vsel %vm318, %v282, 0
      %v323 = vsel %vm318, %v283, 0
      %v326 = vsel %vm318, %v284, 0
      %v329 = vsel %vm318, %v285, 0
      %v332 = vsel %vm318, %v286, 0
      %v335 = vsel %vm318, %v287, 0
      %v338 = vsel %vm318, %v288, 0
      %v341 = vsel %vm318, %v289, 0
      %v344 = vsel %vm318, %v290, 0
      %v347 = vsel %vm318, %v291, 0
      %v350 = vsel %vm318, %v292, 0
      %v353 = vsel %vm318, %v293, 0
      %v356 = vsel %vm318, %v294, 0
      %v359 = vsel %vm318, %v295, 0
      %v362 = vsel %vm318, %v296, 0
      %v365 = vsel %vm318, %v297, 0
      %367 = vmatprep.subr.mxu0 %v299
      %368 = vmatpush1.msra.mxu0 %v298
      %369 = vmatprep.subr.mxu0 %v301
      %370 = vmatpush1.msra.mxu0 %v300
      %371 = vmatprep.subr.mxu0 %v303
      %372 = vmatpush1.msra.mxu0 %v302
      %373 = vmatprep.subr.mxu0 %v305
      %374 = vmatpush1.msra.mxu0 %v304
      %375 = vmatprep.subr.mxu0 0.0
      %376 = vmatpush1.msra.mxu0 0.0
      %377 = vmatprep.subr.mxu0 0.0
      %378 = vmatpush1.msra.mxu0 0.0
      %379 = vmatprep.subr.mxu0 0.0
      %380 = vmatpush1.msra.mxu0 0.0
      %381 = vmatprep.subr.mxu0 0.0
      %382 = vmatpush1.msra.mxu0 0.0
      %383 = vmatprep.subr.mxu0 0.0
      %384 = vmatpush1.msra.mxu0 0.0
      %385 = vmatprep.subr.mxu0 0.0
      %386 = vmatpush1.msra.mxu0 0.0
      %387 = vmatprep.subr.mxu0 0.0
      %388 = vmatpush1.msra.mxu0 0.0
      %389 = vmatprep.subr.mxu0 0.0
      %390 = vmatpush1.msra.mxu0 0.0
      %391 = vmatprep.subr.mxu0 0.0
      %392 = vmatpush1.msra.mxu0 0.0
      %393 = vmatprep.subr.mxu0 0.0
      %394 = vmatpush1.msra.mxu0 0.0
      %395 = vmatprep.subr.mxu0 0.0
      %396 = vmatpush1.msra.mxu0 0.0
      %397 = vmatprep.subr.mxu0 0.0
      %398 = vmatpush1.msra.mxu0 0.0
      %399 = vmatprep.subr.mxu0 0.0
      %400 = vmatpush1.msra.mxu0 0.0
      %401 = vmatprep.subr.mxu0 0.0
      %402 = vmatpush1.msra.mxu0 0.0
      %403 = vmatprep.subr.mxu0 0.0
      %404 = vmatpush1.msra.mxu0 0.0
      %405 = vmatprep.subr.mxu0 0.0
      %406 = vmatpush1.msra.mxu0 0.0
      %407 = vmatprep.subr.mxu0 0.0
      %408 = vmatpush1.msra.mxu0 0.0
      %409 = vmatprep.subr.mxu0 0.0
      %410 = vmatpush1.msra.mxu0 0.0
      %411 = vmatprep.subr.mxu0 0.0
      %412 = vmatpush1.msra.mxu0 0.0
      %413 = vmatprep.subr.mxu0 0.0
      %414 = vmatpush1.msra.mxu0 0.0
      %415 = vmatprep.subr.mxu0 0.0
      %416 = vmatpush1.msra.mxu0 0.0
      %417 = vmatprep.subr.mxu0 0.0
      %418 = vmatpush1.msra.mxu0 0.0
      %419 = vmatprep.subr.mxu0 0.0
      %420 = vmatpush1.msra.mxu0 0.0
      %421 = vmatprep.subr.mxu0 0.0
      %422 = vmatpush1.msra.mxu0 0.0
      %423 = vmatprep.subr.mxu0 0.0
      %424 = vmatpush1.msra.mxu0 0.0
      %425 = vmatprep.subr.mxu0 0.0
      %426 = vmatpush1.msra.mxu0 0.0
      %427 = vmatprep.subr.mxu0 0.0
      %428 = vmatpush1.msra.mxu0 0.0
      %429 = vmatprep.subr.mxu0 0.0
      %430 = vmatpush1.msra.mxu0 0.0
      %431 = vmatprep.mubr.f32.mxu0 0.0
      %432 = vmatmul.mubr.f32.gmra.mrb[0].mxu0 %v320
      %v433 = vpop.f32.mrb[0].mxu0
      %v434 = vadd.f32 %v311, %v433
      %v435 = vpop.f32.mrb[0].mxu0
      %v436 = vadd.f32 %v315, %v435
      %437 = vmatprep.mubr.f32.mxu0 0.0
      %438 = vmatmul.mubr.f32.gmra.mrb[0].mxu0 %v323
      %v439 = vpop.f32.mrb[0].mxu0
      %v440 = vadd.f32 %v311, %v439
      %v441 = vpop.f32.mrb[0].mxu0
      %v442 = vadd.f32 %v315, %v441
      %443 = vmatprep.mubr.f32.mxu0 0.0
      %444 = vmatmul.mubr.f32.gmra.mrb[0].mxu0 %v326
      %v445 = vpop.f32.mrb[0].mxu0
      %v446 = vadd.f32 %v311, %v445
      %v447 = vpop.f32.mrb[0].mxu0
      %v448 = vadd.f32 %v315, %v447
      %449 = vmatprep.mubr.f32.mxu0 0.0
      %450 = vmatmul.mubr.f32.gmra.mrb[0].mxu0 %v329
      %v451 = vpop.f32.mrb[0].mxu0
      %v452 = vadd.f32 %v311, %v451
      %v453 = vpop.f32.mrb[0].mxu0
      %v454 = vadd.f32 %v315, %v453
      %455 = vmatprep.mubr.f32.mxu0 0.0
      %456 = vmatmul.mubr.f32.gmra.mrb[0].mxu0 %v332
      %v457 = vpop.f32.mrb[0].mxu0
      %v458 = vadd.f32 %v311, %v457
      %v459 = vpop.f32.mrb[0].mxu0
      %v460 = vadd.f32 %v315, %v459
      %461 = vmatprep.mubr.f32.mxu0 0.0
      %462 = vmatmul.mubr.f32.gmra.mrb[0].mxu0 %v335
      %v463 = vpop.f32.mrb[0].mxu0
      %v464 = vadd.f32 %v311, %v463
      %v465 = vpop.f32.mrb[0].mxu0
      %v466 = vadd.f32 %v315, %v465
      %467 = vmatprep.mubr.f32.mxu0 0.0
      %468 = vmatmul.mubr.f32.gmra.mrb[0].mxu0 %v338
      %v469 = vpop.f32.mrb[0].mxu0
      %v470 = vadd.f32 %v311, %v469
      %v471 = vpop.f32.mrb[0].mxu0
      %v472 = vadd.f32 %v315, %v471
      %473 = vmatprep.mubr.f32.mxu0 0.0
      %474 = vmatmul.mubr.f32.gmra.mrb[0].mxu0 %v341
      %v475 = vpop.f32.mrb[0].mxu0
      %v476 = vadd.f32 %v311, %v475
      %v477 = vpop.f32.mrb[0].mxu0
      %v478 = vadd.f32 %v315, %v477
      %479 = vmatprep.mubr.f32.mxu0 0.0
      %480 = vmatmul.mubr.f32.gmra.mrb[0].mxu0 %v344
      %v481 = vpop.f32.mrb[0].mxu0
      %v482 = vadd.f32 %v311, %v481
      %v483 = vpop.f32.mrb[0].mxu0
      %v484 = vadd.f32 %v315, %v483
      %485 = vmatprep.mubr.f32.mxu0 0.0
      %486 = vmatmul.mubr.f32.gmra.mrb[0].mxu0 %v347
      %v487 = vpop.f32.mrb[0].mxu0
      %v488 = vadd.f32 %v311, %v487
      %v489 = vpop.f32.mrb[0].mxu0
      %v490 = vadd.f32 %v315, %v489
      %491 = vmatprep.mubr.f32.mxu0 0.0
      %492 = vmatmul.mubr.f32.gmra.mrb[0].mxu0 %v350
      %v493 = vpop.f32.mrb[0].mxu0
      %v494 = vadd.f32 %v311, %v493
      %v495 = vpop.f32.mrb[0].mxu0
      %v496 = vadd.f32 %v315, %v495
      %497 = vmatprep.mubr.f32.mxu0 0.0
      %498 = vmatmul.mubr.f32.gmra.mrb[0].mxu0 %v353
      %v499 = vpop.f32.mrb[0].mxu0
      %v500 = vadd.f32 %v311, %v499
      %v501 = vpop.f32.mrb[0].mxu0
      %v502 = vadd.f32 %v315, %v501
      %503 = vmatprep.mubr.f32.mxu0 0.0
      %504 = vmatmul.mubr.f32.gmra.mrb[0].mxu0 %v356
      %v505 = vpop.f32.mrb[0].mxu0
      %v506 = vadd.f32 %v311, %v505
      %v507 = vpop.f32.mrb[0].mxu0
      %v508 = vadd.f32 %v315, %v507
      %509 = vmatprep.mubr.f32.mxu0 0.0
      %510 = vmatmul.mubr.f32.gmra.mrb[0].mxu0 %v359
      %v511 = vpop.f32.mrb[0].mxu0
      %v512 = vadd.f32 %v311, %v511
      %v513 = vpop.f32.mrb[0].mxu0
      %v514 = vadd.f32 %v315, %v513
      %515 = vmatprep.mubr.f32.mxu0 0.0
      %516 = vmatmul.mubr.f32.gmra.mrb[0].mxu0 %v362
      %v517 = vpop.f32.mrb[0].mxu0
      %v518 = vadd.f32 %v311, %v517
      %v519 = vpop.f32.mrb[0].mxu0
      %v520 = vadd.f32 %v315, %v519
      %521 = vmatprep.mubr.f32.mxu0 0.0
      %522 = vmatmul.mubr.f32.gmra.mrb[0].mxu0 %v365
      %v523 = vpop.f32.mrb[0].mxu0
      %v524 = vadd.f32 %v311, %v523
      %v525 = vpop.f32.mrb[0].mxu0
      %v526 = vadd.f32 %v315, %v525
      %527 = vdwg.mxu0
      %v528 = vmax.f32 %v434, 0.0
      %v529 = vmax.f32 %v436, 0.0
      %v530 = vmax.f32 %v440, 0.0
      %v531 = vmax.f32 %v442, 0.0
      %v532 = vmax.f32 %v446, 0.0
      %v533 = vmax.f32 %v448, 0.0
      %v534 = vmax.f32 %v452, 0.0
      %v535 = vmax.f32 %v454, 0.0
      %v536 = vmax.f32 %v458, 0.0
      %v537 = vmax.f32 %v460, 0.0
      %v538 = vmax.f32 %v464, 0.0
      %v539 = vmax.f32 %v466, 0.0
      %v540 = vmax.f32 %v470, 0.0
      %v541 = vmax.f32 %v472, 0.0
      %v542 = vmax.f32 %v476, 0.0
      %v543 = vmax.f32 %v478, 0.0
      %v544 = vmax.f32 %v482, 0.0
      %v545 = vmax.f32 %v484, 0.0
      %v546 = vmax.f32 %v488, 0.0
      %v547 = vmax.f32 %v490, 0.0
      %v548 = vmax.f32 %v494, 0.0
      %v549 = vmax.f32 %v496, 0.0
      %v550 = vmax.f32 %v500, 0.0
      %v551 = vmax.f32 %v502, 0.0
      %v552 = vmax.f32 %v506, 0.0
      %v553 = vmax.f32 %v508, 0.0
      %v554 = vmax.f32 %v512, 0.0
      %v555 = vmax.f32 %v514, 0.0
      %v556 = vmax.f32 %v518, 0.0
      %v557 = vmax.f32 %v520, 0.0
      %v558 = vmax.f32 %v524, 0.0
      %v559 = vmax.f32 %v526, 0.0
      %v560 = vld [vmem:[%s3] sm:$0xff]
      %v561 = vld [vmem:[%s3 + $0x8] sm:$0xff]
      %v562 = vld [vmem:[%s3 + $0x10] sm:$0xff]
      %v563 = vld [vmem:[%s3 + $0x18] sm:$0xff]
      %v564 = vld [vmem:[%s3 + $0x20] sm:$0xff]
      %v565 = vld [vmem:[%s3 + $0x28] sm:$0xff]
      %v566 = vld [vmem:[%s3 + $0x30] sm:$0xff]
      %v567 = vld [vmem:[%s3 + $0x38] sm:$0xff]
      %v568 = vld [vmem:[%s3 + $0x40] sm:$0xff]
      %v569 = vld [vmem:[%s3 + $0x48] sm:$0xff]
      %v570 = vld [vmem:[%s3 + $0x50] sm:$0xff]
      %v571 = vld [vmem:[%s3 + $0x58] sm:$0xff]
      %v572 = vld [vmem:[%s3 + $0x60] sm:$0xff]
      %v573 = vld [vmem:[%s3 + $0x68] sm:$0xff]
      %v574 = vld [vmem:[%s3 + $0x70] sm:$0xff]
      %v575 = vld [vmem:[%s3 + $0x78] sm:$0xff]
      %v576 = vld [vmem:[%s3 + $0x80] sm:$0xff]
      %v577 = vld [vmem:[%s3 + $0x88] sm:$0xff]
      %v578 = vld [vmem:[%s3 + $0x90] sm:$0xff]
      %v579 = vld [vmem:[%s3 + $0x98] sm:$0xff]
      %v580 = vld [vmem:[%s3 + $0xa0] sm:$0xff]
      %v581 = vld [vmem:[%s3 + $0xa8] sm:$0xff]
      %v582 = vld [vmem:[%s3 + $0xb0] sm:$0xff]
      %v583 = vld [vmem:[%s3 + $0xb8] sm:$0xff]
      %v584 = vld [vmem:[%s3 + $0xc0] sm:$0xff]
      %v585 = vld [vmem:[%s3 + $0xc8] sm:$0xff]
      %v586 = vld [vmem:[%s3 + $0xd0] sm:$0xff]
      %v587 = vld [vmem:[%s3 + $0xd8] sm:$0xff]
      %v588 = vld [vmem:[%s3 + $0xe0] sm:$0xff]
      %v589 = vld [vmem:[%s3 + $0xe8] sm:$0xff]
      %v590 = vld [vmem:[%s3 + $0xf0] sm:$0xff]
      %v591 = vld [vmem:[%s3 + $0xf8] sm:$0xff]
      %v592 = vld [vmem:[%s4] sm:$0x1]
      %v594 = vlaneseq
      %v595 = vshrl.u32 %v594, 7
      %v596 = vsub.s32 0, %v595
      %v597 = vrot.slane %v592, %v596
      %599 = vmatprep.subr.mxu0 0.0
      %600 = vmatpush1.msra.mxu0 %v560
      %601 = vmatprep.subr.mxu0 0.0
      %602 = vmatpush1.msra.mxu0 %v561
      %603 = vmatprep.subr.mxu0 0.0
      %604 = vmatpush1.msra.mxu0 %v562
      %605 = vmatprep.subr.mxu0 0.0
      %606 = vmatpush1.msra.mxu0 %v563
      %607 = vmatprep.subr.mxu0 0.0
      %608 = vmatpush1.msra.mxu0 %v564
      %609 = vmatprep.subr.mxu0 0.0
      %610 = vmatpush1.msra.mxu0 %v565
      %611 = vmatprep.subr.mxu0 0.0
      %612 = vmatpush1.msra.mxu0 %v566
      %613 = vmatprep.subr.mxu0 0.0
      %614 = vmatpush1.msra.mxu0 %v567
      %615 = vmatprep.subr.mxu0 0.0
      %616 = vmatpush1.msra.mxu0 %v568
      %617 = vmatprep.subr.mxu0 0.0
      %618 = vmatpush1.msra.mxu0 %v569
      %619 = vmatprep.subr.mxu0 0.0
      %620 = vmatpush1.msra.mxu0 %v570
      %621 = vmatprep.subr.mxu0 0.0
      %622 = vmatpush1.msra.mxu0 %v571
      %623 = vmatprep.subr.mxu0 0.0
      %624 = vmatpush1.msra.mxu0 %v572
      %625 = vmatprep.subr.mxu0 0.0
      %626 = vmatpush1.msra.mxu0 %v573
      %627 = vmatprep.subr.mxu0 0.0
      %628 = vmatpush1.msra.mxu0 %v574
      %629 = vmatprep.subr.mxu0 0.0
      %630 = vmatpush1.msra.mxu0 %v575
      %631 = vmatprep.subr.mxu0 0.0
      %632 = vmatpush1.msra.mxu0 %v576
      %633 = vmatprep.subr.mxu0 0.0
      %634 = vmatpush1.msra.mxu0 %v577
      %635 = vmatprep.subr.mxu0 0.0
      %636 = vmatpush1.msra.mxu0 %v578
      %637 = vmatprep.subr.mxu0 0.0
      %638 = vmatpush1.msra.mxu0 %v579
      %639 = vmatprep.subr.mxu0 0.0
      %640 = vmatpush1.msra.mxu0 %v580
      %641 = vmatprep.subr.mxu0 0.0
      %642 = vmatpush1.msra.mxu0 %v581
      %643 = vmatprep.subr.mxu0 0.0
      %644 = vmatpush1.msra.mxu0 %v582
      %645 = vmatprep.subr.mxu0 0.0
      %646 = vmatpush1.msra.mxu0 %v583
      %647 = vmatprep.subr.mxu0 0.0
      %648 = vmatpush1.msra.mxu0 %v584
      %649 = vmatprep.subr.mxu0 0.0
      %650 = vmatpush1.msra.mxu0 %v585
      %651 = vmatprep.subr.mxu0 0.0
      %652 = vmatpush1.msra.mxu0 %v586
      %653 = vmatprep.subr.mxu0 0.0
      %654 = vmatpush1.msra.mxu0 %v587
      %655 = vmatprep.subr.mxu0 0.0
      %656 = vmatpush1.msra.mxu0 %v588
      %657 = vmatprep.subr.mxu0 0.0
      %658 = vmatpush1.msra.mxu0 %v589
      %659 = vmatprep.subr.mxu0 0.0
      %660 = vmatpush1.msra.mxu0 %v590
      %661 = vmatprep.subr.mxu0 0.0
      %662 = vmatpush1.msra.mxu0 %v591
      %663 = vmatprep.mubr.f32.mxu0 %v529
      %664 = vmatmul.mubr.f32.gmra.mrb[0].mxu0 %v528
      %v665 = vpop.f32.mrb[0].mxu0
      %v666 = vadd.f32 %v597, %v665
      %v667 = vpop.f32.mrb[0].mxu0
      %668 = vmatprep.mubr.f32.mxu0 %v531
      %669 = vmatmul.mubr.f32.gmra.mrb[0].mxu0 %v530
      %v670 = vpop.f32.mrb[0].mxu0
      %v671 = vadd.f32 %v597, %v670
      %v672 = vpop.f32.mrb[0].mxu0
      %673 = vmatprep.mubr.f32.mxu0 %v533
      %674 = vmatmul.mubr.f32.gmra.mrb[0].mxu0 %v532
      %v675 = vpop.f32.mrb[0].mxu0
      %v676 = vadd.f32 %v597, %v675
      %v677 = vpop.f32.mrb[0].mxu0
      %678 = vmatprep.mubr.f32.mxu0 %v535
      %679 = vmatmul.mubr.f32.gmra.mrb[0].mxu0 %v534
      %v680 = vpop.f32.mrb[0].mxu0
      %v681 = vadd.f32 %v597, %v680
      %v682 = vpop.f32.mrb[0].mxu0
      %683 = vmatprep.mubr.f32.mxu0 %v537
      %684 = vmatmul.mubr.f32.gmra.mrb[0].mxu0 %v536
      %v685 = vpop.f32.mrb[0].mxu0
      %v686 = vadd.f32 %v597, %v685
      %v687 = vpop.f32.mrb[0].mxu0
      %688 = vmatprep.mubr.f32.mxu0 %v539
      %689 = vmatmul.mubr.f32.gmra.mrb[0].mxu0 %v538
      %v690 = vpop.f32.mrb[0].mxu0
      %v691 = vadd.f32 %v597, %v690
      %v692 = vpop.f32.mrb[0].mxu0
      %693 = vmatprep.mubr.f32.mxu0 %v541
      %694 = vmatmul.mubr.f32.gmra.mrb[0].mxu0 %v540
      %v695 = vpop.f32.mrb[0].mxu0
      %v696 = vadd.f32 %v597, %v695
      %v697 = vpop.f32.mrb[0].mxu0
      %698 = vmatprep.mubr.f32.mxu0 %v543
      %699 = vmatmul.mubr.f32.gmra.mrb[0].mxu0 %v542
      %v700 = vpop.f32.mrb[0].mxu0
      %v701 = vadd.f32 %v597, %v700
      %v702 = vpop.f32.mrb[0].mxu0
      %703 = vmatprep.mubr.f32.mxu0 %v545
      %704 = vmatmul.mubr.f32.gmra.mrb[0].mxu0 %v544
      %v705 = vpop.f32.mrb[0].mxu0
      %v706 = vadd.f32 %v597, %v705
      %v707 = vpop.f32.mrb[0].mxu0
      %708 = vmatprep.mubr.f32.mxu0 %v547
      %709 = vmatmul.mubr.f32.gmra.mrb[0].mxu0 %v546
      %v710 = vpop.f32.mrb[0].mxu0
      %v711 = vadd.f32 %v597, %v710
      %v712 = vpop.f32.mrb[0].mxu0
      %713 = vmatprep.mubr.f32.mxu0 %v549
      %714 = vmatmul.mubr.f32.gmra.mrb[0].mxu0 %v548
      %v715 = vpop.f32.mrb[0].mxu0
      %v716 = vadd.f32 %v597, %v715
      %v717 = vpop.f32.mrb[0].mxu0
      %718 = vmatprep.mubr.f32.mxu0 %v551
      %719 = vmatmul.mubr.f32.gmra.mrb[0].mxu0 %v550
      %v720 = vpop.f32.mrb[0].mxu0
      %v721 = vadd.f32 %v597, %v720
      %v722 = vpop.f32.mrb[0].mxu0
      %723 = vmatprep.mubr.f32.mxu0 %v553
      %724 = vmatmul.mubr.f32.gmra.mrb[0].mxu0 %v552
      %v725 = vpop.f32.mrb[0].mxu0
      %v726 = vadd.f32 %v597, %v725
      %v727 = vpop.f32.mrb[0].mxu0
      %728 = vmatprep.mubr.f32.mxu0 %v555
      %729 = vmatmul.mubr.f32.gmra.mrb[0].mxu0 %v554
      %v730 = vpop.f32.mrb[0].mxu0
      %v731 = vadd.f32 %v597, %v730
      %v732 = vpop.f32.mrb[0].mxu0
      %733 = vmatprep.mubr.f32.mxu0 %v557
      %734 = vmatmul.mubr.f32.gmra.mrb[0].mxu0 %v556
      %v735 = vpop.f32.mrb[0].mxu0
      %v736 = vadd.f32 %v597, %v735
      %v737 = vpop.f32.mrb[0].mxu0
      %738 = vmatprep.mubr.f32.mxu0 %v559
      %739 = vmatmul.mubr.f32.gmra.mrb[0].mxu0 %v558
      %v740 = vpop.f32.mrb[0].mxu0
      %v741 = vadd.f32 %v597, %v740
      %v742 = vpop.f32.mrb[0].mxu0
      %743 = vdwg.mxu0
      %v744 = vmax.f32 %v666, 0.0
      %v745 = vmax.f32 %v671, 0.0
      %v746 = vmax.f32 %v676, 0.0
      %v747 = vmax.f32 %v681, 0.0
      %v748 = vmax.f32 %v686, 0.0
      %v749 = vmax.f32 %v691, 0.0
      %v750 = vmax.f32 %v696, 0.0
      %v751 = vmax.f32 %v701, 0.0
      %v752 = vmax.f32 %v706, 0.0
      %v753 = vmax.f32 %v711, 0.0
      %v754 = vmax.f32 %v716, 0.0
      %v755 = vmax.f32 %v721, 0.0
      %v756 = vmax.f32 %v726, 0.0
      %v757 = vmax.f32 %v731, 0.0
      %v758 = vmax.f32 %v736, 0.0
      %v759 = vmax.f32 %v741, 0.0
      %v760 = vld [vmem:[%s5] sm:$0xff]
      %v761 = vld [vmem:[%s5 + $0x8] sm:$0xff]
      %v762 = vld [vmem:[%s5 + $0x10] sm:$0xff]
      %v763 = vld [vmem:[%s5 + $0x18] sm:$0xff]
      %v764 = vld [vmem:[%s5 + $0x20] sm:$0xff]
      %v765 = vld [vmem:[%s5 + $0x28] sm:$0xff]
      %v766 = vld [vmem:[%s5 + $0x30] sm:$0xff]
      %v767 = vld [vmem:[%s5 + $0x38] sm:$0xff]
      %v768 = vld [vmem:[%s5 + $0x40] sm:$0xff]
      %v769 = vld [vmem:[%s5 + $0x48] sm:$0xff]
      %v770 = vld [vmem:[%s5 + $0x50] sm:$0xff]
      %v771 = vld [vmem:[%s5 + $0x58] sm:$0xff]
      %v772 = vld [vmem:[%s5 + $0x60] sm:$0xff]
      %v773 = vld [vmem:[%s5 + $0x68] sm:$0xff]
      %v774 = vld [vmem:[%s5 + $0x70] sm:$0xff]
      %v775 = vld [vmem:[%s5 + $0x78] sm:$0xff]
      %v776 = vld [vmem:[%s6] sm:$0x1]
      %v778 = vlaneseq
      %v779 = vshrl.u32 %v778, 7
      %v780 = vsub.s32 0, %v779
      %v781 = vrot.slane %v776, %v780
      %783 = vmatprep.subr.mxu0 0.0
      %784 = vmatpush1.msra.mxu0 %v760
      %785 = vmatprep.subr.mxu0 0.0
      %786 = vmatpush1.msra.mxu0 %v761
      %787 = vmatprep.subr.mxu0 0.0
      %788 = vmatpush1.msra.mxu0 %v762
      %789 = vmatprep.subr.mxu0 0.0
      %790 = vmatpush1.msra.mxu0 %v763
      %791 = vmatprep.subr.mxu0 0.0
      %792 = vmatpush1.msra.mxu0 %v764
      %793 = vmatprep.subr.mxu0 0.0
      %794 = vmatpush1.msra.mxu0 %v765
      %795 = vmatprep.subr.mxu0 0.0
      %796 = vmatpush1.msra.mxu0 %v766
      %797 = vmatprep.subr.mxu0 0.0
      %798 = vmatpush1.msra.mxu0 %v767
      %799 = vmatprep.subr.mxu0 0.0
      %800 = vmatpush1.msra.mxu0 %v768
      %801 = vmatprep.subr.mxu0 0.0
      %802 = vmatpush1.msra.mxu0 %v769
      %803 = vmatprep.subr.mxu0 0.0
      %804 = vmatpush1.msra.mxu0 %v770
      %805 = vmatprep.subr.mxu0 0.0
      %806 = vmatpush1.msra.mxu0 %v771
      %807 = vmatprep.subr.mxu0 0.0
      %808 = vmatpush1.msra.mxu0 %v772
      %809 = vmatprep.subr.mxu0 0.0
      %810 = vmatpush1.msra.mxu0 %v773
      %811 = vmatprep.subr.mxu0 0.0
      %812 = vmatpush1.msra.mxu0 %v774
      %813 = vmatprep.subr.mxu0 0.0
      %814 = vmatpush1.msra.mxu0 %v775
      %815 = vmatprep.subr.mxu0 0.0
      %816 = vmatpush1.msra.mxu0 0.0
      %817 = vmatprep.subr.mxu0 0.0
      %818 = vmatpush1.msra.mxu0 0.0
      %819 = vmatprep.subr.mxu0 0.0
      %820 = vmatpush1.msra.mxu0 0.0
      %821 = vmatprep.subr.mxu0 0.0
      %822 = vmatpush1.msra.mxu0 0.0
      %823 = vmatprep.subr.mxu0 0.0
      %824 = vmatpush1.msra.mxu0 0.0
      %825 = vmatprep.subr.mxu0 0.0
      %826 = vmatpush1.msra.mxu0 0.0
      %827 = vmatprep.subr.mxu0 0.0
      %828 = vmatpush1.msra.mxu0 0.0
      %829 = vmatprep.subr.mxu0 0.0
      %830 = vmatpush1.msra.mxu0 0.0
      %831 = vmatprep.subr.mxu0 0.0
      %832 = vmatpush1.msra.mxu0 0.0
      %833 = vmatprep.subr.mxu0 0.0
      %834 = vmatpush1.msra.mxu0 0.0
      %835 = vmatprep.subr.mxu0 0.0
      %836 = vmatpush1.msra.mxu0 0.0
      %837 = vmatprep.subr.mxu0 0.0
      %838 = vmatpush1.msra.mxu0 0.0
      %839 = vmatprep.subr.mxu0 0.0
      %840 = vmatpush1.msra.mxu0 0.0
      %841 = vmatprep.subr.mxu0 0.0
      %842 = vmatpush1.msra.mxu0 0.0
      %843 = vmatprep.subr.mxu0 0.0
      %844 = vmatpush1.msra.mxu0 0.0
      %845 = vmatprep.subr.mxu0 0.0
      %846 = vmatpush1.msra.mxu0 0.0
      %847 = vmatprep.mubr.f32.mxu0 0.0
      %848 = vmatmul.mubr.f32.gmra.mrb[0].mxu0 %v744
      %v849 = vpop.f32.mrb[0].mxu0
      %v850 = vadd.f32 %v781, %v849
      %v851 = vpop.f32.mrb[0].mxu0
      %852 = vmatprep.mubr.f32.mxu0 0.0
      %853 = vmatmul.mubr.f32.gmra.mrb[0].mxu0 %v745
      %v854 = vpop.f32.mrb[0].mxu0
      %v855 = vadd.f32 %v781, %v854
      %v856 = vpop.f32.mrb[0].mxu0
      %857 = vmatprep.mubr.f32.mxu0 0.0
      %858 = vmatmul.mubr.f32.gmra.mrb[0].mxu0 %v746
      %v859 = vpop.f32.mrb[0].mxu0
      %v860 = vadd.f32 %v781, %v859
      %v861 = vpop.f32.mrb[0].mxu0
      %862 = vmatprep.mubr.f32.mxu0 0.0
      %863 = vmatmul.mubr.f32.gmra.mrb[0].mxu0 %v747
      %v864 = vpop.f32.mrb[0].mxu0
      %v865 = vadd.f32 %v781, %v864
      %v866 = vpop.f32.mrb[0].mxu0
      %867 = vmatprep.mubr.f32.mxu0 0.0
      %868 = vmatmul.mubr.f32.gmra.mrb[0].mxu0 %v748
      %v869 = vpop.f32.mrb[0].mxu0
      %v870 = vadd.f32 %v781, %v869
      %v871 = vpop.f32.mrb[0].mxu0
      %872 = vmatprep.mubr.f32.mxu0 0.0
      %873 = vmatmul.mubr.f32.gmra.mrb[0].mxu0 %v749
      %v874 = vpop.f32.mrb[0].mxu0
      %v875 = vadd.f32 %v781, %v874
      %v876 = vpop.f32.mrb[0].mxu0
      %877 = vmatprep.mubr.f32.mxu0 0.0
      %878 = vmatmul.mubr.f32.gmra.mrb[0].mxu0 %v750
      %v879 = vpop.f32.mrb[0].mxu0
      %v880 = vadd.f32 %v781, %v879
      %v881 = vpop.f32.mrb[0].mxu0
      %882 = vmatprep.mubr.f32.mxu0 0.0
      %883 = vmatmul.mubr.f32.gmra.mrb[0].mxu0 %v751
      %v884 = vpop.f32.mrb[0].mxu0
      %v885 = vadd.f32 %v781, %v884
      %v886 = vpop.f32.mrb[0].mxu0
      %887 = vmatprep.mubr.f32.mxu0 0.0
      %888 = vmatmul.mubr.f32.gmra.mrb[0].mxu0 %v752
      %v889 = vpop.f32.mrb[0].mxu0
      %v890 = vadd.f32 %v781, %v889
      %v891 = vpop.f32.mrb[0].mxu0
      %892 = vmatprep.mubr.f32.mxu0 0.0
      %893 = vmatmul.mubr.f32.gmra.mrb[0].mxu0 %v753
      %v894 = vpop.f32.mrb[0].mxu0
      %v895 = vadd.f32 %v781, %v894
      %v896 = vpop.f32.mrb[0].mxu0
      %897 = vmatprep.mubr.f32.mxu0 0.0
      %898 = vmatmul.mubr.f32.gmra.mrb[0].mxu0 %v754
      %v899 = vpop.f32.mrb[0].mxu0
      %v900 = vadd.f32 %v781, %v899
      %v901 = vpop.f32.mrb[0].mxu0
      %902 = vmatprep.mubr.f32.mxu0 0.0
      %903 = vmatmul.mubr.f32.gmra.mrb[0].mxu0 %v755
      %v904 = vpop.f32.mrb[0].mxu0
      %v905 = vadd.f32 %v781, %v904
      %v906 = vpop.f32.mrb[0].mxu0
      %907 = vmatprep.mubr.f32.mxu0 0.0
      %908 = vmatmul.mubr.f32.gmra.mrb[0].mxu0 %v756
      %v909 = vpop.f32.mrb[0].mxu0
      %v910 = vadd.f32 %v781, %v909
      %v911 = vpop.f32.mrb[0].mxu0
      %912 = vmatprep.mubr.f32.mxu0 0.0
      %913 = vmatmul.mubr.f32.gmra.mrb[0].mxu0 %v757
      %v914 = vpop.f32.mrb[0].mxu0
      %v915 = vadd.f32 %v781, %v914
      %v916 = vpop.f32.mrb[0].mxu0
      %917 = vmatprep.mubr.f32.mxu0 0.0
      %918 = vmatmul.mubr.f32.gmra.mrb[0].mxu0 %v758
      %v919 = vpop.f32.mrb[0].mxu0
      %v920 = vadd.f32 %v781, %v919
      %v921 = vpop.f32.mrb[0].mxu0
      %922 = vmatprep.mubr.f32.mxu0 0.0
      %923 = vmatmul.mubr.f32.gmra.mrb[0].mxu0 %v759
      %v924 = vpop.f32.mrb[0].mxu0
      %v925 = vadd.f32 %v781, %v924
      %v926 = vpop.f32.mrb[0].mxu0
      %927 = vdwg.mxu0
      %928 = vst [vmem:[%s280] sm:$0xff] %v850
      %929 = vst [vmem:[%s280 + $0x8] sm:$0xff] %v855
      %930 = vst [vmem:[%s280 + $0x10] sm:$0xff] %v860
      %931 = vst [vmem:[%s280 + $0x18] sm:$0xff] %v865
      %932 = vst [vmem:[%s280 + $0x20] sm:$0xff] %v870
      %933 = vst [vmem:[%s280 + $0x28] sm:$0xff] %v875
      %934 = vst [vmem:[%s280 + $0x30] sm:$0xff] %v880
      %935 = vst [vmem:[%s280 + $0x38] sm:$0xff] %v885
      %936 = vst [vmem:[%s280 + $0x40] sm:$0xff] %v890
      %937 = vst [vmem:[%s280 + $0x48] sm:$0xff] %v895
      %938 = vst [vmem:[%s280 + $0x50] sm:$0xff] %v900
      %939 = vst [vmem:[%s280 + $0x58] sm:$0xff] %v905
      %940 = vst [vmem:[%s280 + $0x60] sm:$0xff] %v910
      %941 = vst [vmem:[%s280 + $0x68] sm:$0xff] %v915
      %942 = vst [vmem:[%s280 + $0x70] sm:$0xff] %v920
      %943 = vst [vmem:[%s280 + $0x78] sm:$0xff] %v925
      %s944 = smul.u32 16, %s18
      %p945 = scmp.lt.s32.totalorder %s944, 31
      %s946 = scalar_select %p945, %s944, 31
      %s947 = smul.addr %s946, 8
      %s948 = scalar_lea.vmem %s7, %s947
      // Predicated region
      $region49: #{mynet_forward.1} parent=47 // pred_check
        %p949 = pneg %p188
      $region50: #{mynet_forward.1} parent=47 // pred_check_branch
        %951 = sbr.rel (%p949) target = $region52
      $region51: #{mynet_forward.1} parent=47 // pred_region
        %s952 = smul.u32 16, %s18
      $region52: #{mynet_forward.1} parent=47 // pred_fallthru
        _
    $region48: #{mynet_forward.1} parent=5 // pred_fallthru
      _
    %p953 = scmp.le.s32.totalorder 2, %s13
    // Predicated region
    $region53: #{mynet_forward.1} parent=5 // pred_check
      %p954 = pneg %p953
    $region54: #{mynet_forward.1} parent=5 // pred_check_branch
      %956 = sbr.rel (%p954) target = $region56
    $region55: #{mynet_forward.1} parent=5 // pred_region
      %s957 = ssub.s32 %s13, 2
      // Predicated region
      $region57: #{mynet_forward.1} parent=55 // pred_check
        %p958 = pneg %p194
      $region58: #{mynet_forward.1} parent=55 // pred_check_branch
        %960 = sbr.rel (%p958) target = $region60
      $region59: #{mynet_forward.1} parent=55 // pred_region
        %s961 = smul.u32 16, %s19
        %p962 = scmp.lt.s32.totalorder %s961, 31
        %s963 = scalar_select %p962, %s961, 31
        %s964 = smul.addr %s963, 8
        %s965 = scalar_lea.vmem %s7, %s964
      $region60: #{mynet_forward.1} parent=55 // pred_fallthru
        _
    $region56: #{mynet_forward.1} parent=5 // pred_fallthru
      _
  $region6: #{mynet_forward.1} parent=0 // loop_footer
    %s17 = sadd.s32 1, %s13
  $region7: #{mynet_forward.1} parent=0 // loop_footer_branch
    %12 = sbr.rel target = $region3
  $region8: #{mynet_forward.1} parent=0 // loop_exit
    _

</llo_original>
